<compile_context>
chip_gen: v7x
topology: tpu7x:2x2x1
jax: 0.10.0
libtpu: 0.0.40
codegen_flags: <defaults>
</compile_context>

<pallas_src>
import jax
import jax.numpy as jnp
from jax.experimental import pallas as pl
from jax.experimental.pallas import tpu as pltpu


def _pos_emb_kernel(w_ref, o_ref):
    # w_ref: (1, TL)   lane-dense slice of the flattened positional table.
    # o_ref: (TB, TL)  output slab covering TB batch elements.
    o_ref[...] = jnp.broadcast_to(w_ref[...], o_ref.shape)


def _vmem_budget():
    """Generation-aware (out_tile_bytes, vmem_limit_bytes).

    v5e/v6e have 128 MiB VMEM -> ~16 MiB output blocks, 80 MiB scoped limit.
    v7x has 64 MiB VMEM per TC -> ~8 MiB output blocks, 48 MiB scoped limit.
    Falls back to the conservative (v7x) numbers if the query fails.
    """
    try:
        vmem_cap = int(pltpu.get_tpu_info().vmem_capacity_bytes)
    except Exception:
        vmem_cap = 64 * 1024 * 1024
    if vmem_cap >= 96 * 1024 * 1024:       # v5e / v6e (128 MiB VMEM)
        return 16 * 1024 * 1024, 80 * 1024 * 1024
    return 8 * 1024 * 1024, 48 * 1024 * 1024   # v7x (64 MiB per TC)


def _choose_tiles(batch_size, flat_len, itemsize, out_tile_bytes):
    """Pick (TB, TL) so the output block is big (toward the HBM-write
    roofline) while double-buffered input+output stays comfortably under the
    generation-aware vmem_limit_bytes chosen in _vmem_budget()."""
    row_bytes = flat_len * itemsize

    # Whole output fits in one block: single grid step.
    if batch_size * row_bytes <= out_tile_bytes:
        return batch_size, flat_len

    tb_budget = out_tile_bytes // max(row_bytes, 1)
    if tb_budget >= 8:
        # Fuse a sublane-aligned group of batch rows, keep full lane width.
        tb = min(batch_size, (tb_budget // 8) * 8)
        return tb, flat_len

    # A single row (or 8 rows) is already large: take up to 8 rows and split
    # the lane dimension into 128-aligned slabs that fit the budget.
    tb = min(batch_size, 8)
    tl = (out_tile_bytes // (tb * itemsize)) // 128 * 128
    tl = max(128, tl)
    return tb, min(tl, flat_len)


def positional_embedding(weight: jax.Array, batch_size: int) -> jax.Array:
    """Tile the positional table across the batch via a Pallas copy kernel."""
    max_len, d_model = weight.shape
    flat_len = max_len * d_model
    itemsize = jnp.dtype(weight.dtype).itemsize

    # Lane-dense view of the table: (1, max_len*d_model).
    w_flat = weight.reshape(1, flat_len)

    out_tile_bytes, vmem_limit_bytes = _vmem_budget()
    tb, tl = _choose_tiles(batch_size, flat_len, itemsize, out_tile_bytes)

    # Lane slabs on the OUTER axis, batch on the INNER axis: the input block
    # index (0, l) is constant across the inner loop, so the table is DMA'd
    # from HBM once per lane slab (once total when tl == flat_len) instead of
    # once per batch tile.
    grid = (pl.cdiv(flat_len, tl), pl.cdiv(batch_size, tb))

    out_flat = pl.pallas_call(
        _pos_emb_kernel,
        out_shape=jax.ShapeDtypeStruct((batch_size, flat_len), weight.dtype),
        grid_spec=pltpu.PrefetchScalarGridSpec(
            num_scalar_prefetch=0,
            grid=grid,
            in_specs=[
                # Lane-dense slab of the (single) table row; same block for
                # every batch tile in the inner loop.
                pl.BlockSpec((1, tl), lambda l, b: (0, l)),
            ],
            # Batch-fused, lane-dense output block.
            out_specs=pl.BlockSpec((tb, tl), lambda l, b: (b, l)),
        ),
        compiler_params=pltpu.CompilerParams(
            # Both axes are independent writes; on multi-TC parts (v7x) the
            # compiler may shard the parallel grid across TensorCores.
            dimension_semantics=("parallel", "parallel"),
            vmem_limit_bytes=vmem_limit_bytes,
        ),
    )(w_flat)

    # Undo the lane-dense layout plumbing outside the kernel.
    return out_flat.reshape(batch_size, max_len, d_model)


class PositionalEmbedding:
    """JAX/Pallas port of the PyTorch module."""

    def __init__(self, max_len: int, d_model: int, key: jax.Array):
        # nn.Embedding default init: N(0, 1)
        self.weight = jax.random.normal(key, (max_len, d_model),
                                        dtype=jnp.float32)

    def __call__(self, x: jax.Array) -> jax.Array:
        batch_size = x.shape[0]
        return positional_embedding(self.weight, batch_size)


if __name__ == "__main__":
    key = jax.random.PRNGKey(0)
    k_w, k_x = jax.random.split(key)

    batch, seq, d_model, max_len = 2, 8, 32, 16

    module = PositionalEmbedding(max_len=max_len, d_model=d_model, key=k_w)
    # x's contents are irrelevant to the forward pass; only x.shape[0] is used.
    x = jax.random.normal(k_x, (batch, seq, d_model), dtype=jnp.float32)

    out = module(x)
    out = jax.block_until_ready(out)

    # Reference check: broadcast of the weight across batch.
    ref = jnp.broadcast_to(module.weight[None], (batch, max_len, d_model))
    assert out.shape == (batch, max_len, d_model)
    assert out.dtype == jnp.float32
    assert bool(jnp.allclose(out, ref))

    print("KERNEL_OK")
</pallas_src>

<mosaic_0001>
module attributes {stable_mosaic.version = 11 : i64} {
  func.func @_pos_emb_kernel(%arg0: i32, %arg1: i32, %arg2: memref<1x512xf32, #tpu.memory_space<vmem>>, %arg3: memref<2x512xf32, #tpu.memory_space<vmem>>) attributes {dimension_semantics = [#tpu.dimension_semantics<parallel>, #tpu.dimension_semantics<parallel>], iteration_bounds = array<i64: 1, 1>, scalar_prefetch = 0 : i64, scratch_operands = 0 : i64, tpu.core_type = #tpu.core_type<tc>, window_params = [{transform_indices = @transform_0, window_bounds = array<i64: 1, 512>}, {transform_indices = @transform_1, window_bounds = array<i64: 2, 512>}]} {
    %c0 = arith.constant 0 : index
    %c0_0 = arith.constant 0 : index
    %0 = vector.load %arg2[%c0, %c0_0] : memref<1x512xf32, #tpu.memory_space<vmem>>, vector<1x512xf32>
    %1 = vector.shape_cast %0 : vector<1x512xf32> to vector<1x512xf32>
    %2 = vector.broadcast %1 : vector<1x512xf32> to vector<2x512xf32>
    %c0_1 = arith.constant 0 : index
    %c0_2 = arith.constant 0 : index
    %3 = vector.load %arg3[%c0_1, %c0_2] : memref<2x512xf32, #tpu.memory_space<vmem>>, vector<2x512xf32>
    tpu.vector_store %arg3[%c0_1, %c0_2], %2 {strides = array<i32>} : memref<2x512xf32, #tpu.memory_space<vmem>>, vector<2x512xf32>,
    return
  }
  func.func @transform_0(%arg0: i32, %arg1: i32) -> (i32, i32) {
    %c0_i32 = arith.constant 0 : i32
    %c0_i32_0 = arith.constant 0 : i32
    return %c0_i32, %arg0 : i32, i32
  }
  func.func @transform_1(%arg0: i32, %arg1: i32) -> (i32, i32) {
    %c0_i32 = arith.constant 0 : i32
    return %arg1, %arg0 : i32, i32
  }
}

</mosaic_0001>

<llo_original>
// kernel: tpu_custom_call.1
$region0: #{tpu_custom_call.1}
  #allocation0 [shape = 'u32[]', space=smem, size = 0x4, offset = 0x4, fixed_abs, tag = 'smem constant byte address 0x4 - core index']
  #allocation1 [shape = 'u32[144,128]{1,0:T(1,128)}', space=vmem, size = 0x12000, scoped, tag = 'internal scratch']
  %s0 = inlined_call_operand.hbm [shape: f32[1,512], index: 0, kind: input, shape index: {}]
  %s1 = inlined_call_operand.hbm [shape: f32[2,512], index: 1, kind: output, shape index: {}]
  %s2 = sld [smem:[#allocation0]]
  $region18: #{tpu_custom_call.1} parent=0
    _
  %s4 = ssub.s32 1, %s2
  %s5 = scalar_select 0, %s4, %s2
  $region1: #{tpu_custom_call.1} parent=0
    #allocation2 [shape = 'u8[2048]{0}', space=vmem, size = 0x800, scoped, tag = 'input window, operand 0, single buffered']
    #allocation3 [shape = 's32[1]{0}', space=sflag, size = 0x4, scoped, tag = 'scoped memory for tpu_custom_call.1']
    #allocation4 [shape = 's32[1]{0}', space=sflag, size = 0x4, scoped, tag = 'scoped memory for tpu_custom_call.1']
    #allocation5 [shape = 'u8[4096]{0}', space=vmem, size = 0x1000, scoped, tag = 'output window, operand 0, single buffered']
    %6 = vsyncpa [#allocation3], 0
    %7 = vsyncpa [#allocation4], 0
    // Predicated region
    $region2: #{tpu_custom_call.1} parent=1 // pred_check
      _
    $region3: #{tpu_custom_call.1} parent=1 // pred_check_branch
      %9 = sbr.rel (0) target = $region5
    $region4: #{tpu_custom_call.1} parent=1 // pred_region
      %s11 = ssub.s32 64, 64
      %12 = vsyncadd [#allocation3], %s11
      %s14 = sshll.u32 [#allocation2], 4
      %s15 = int_to_ptr.vmem [resolvable:$true] %s14
      %17 = dma.hbm_to_vmem [thread:$0]  %s0, 64, %s15, [#allocation3]
    $region5: #{tpu_custom_call.1} parent=1 // pred_fallthru
      _
    // Predicated region
    $region6: #{tpu_custom_call.1} parent=1 // pred_check
      _
    $region7: #{tpu_custom_call.1} parent=1 // pred_check_branch
      %19 = sbr.rel (0) target = $region9
    $region8: #{tpu_custom_call.1} parent=1 // pred_region
      %20 = dma.done [#allocation3], 64
    $region9: #{tpu_custom_call.1} parent=1 // pred_fallthru
      _
    %v21 = vld [vmem:[#allocation2] sm:$0xf]
    %v23 = vlaneseq
    %v24 = vshrl.u32 %v23, 7
    %v25 = vsub.s32 0, %v24
    %v26 = vrot.slane %v21, %v25
    %v27 = vlaneseq
    %v28 = vshrl.u32 %v27, 7
    %v29 = vsub.s32 1, %v28
    %v30 = vrot.slane %v21, %v29
    %v31 = vlaneseq
    %v32 = vshrl.u32 %v31, 7
    %v33 = vsub.s32 2, %v32
    %v34 = vrot.slane %v21, %v33
    %v35 = vlaneseq
    %v36 = vshrl.u32 %v35, 7
    %v37 = vsub.s32 3, %v36
    %v38 = vrot.slane %v21, %v37
    %v39 = vcombine.low %v26, %v30
    %v40 = vcombine.low %v34, %v38
    %v42 = vunpack.c.l.s4 1983009808
    %v43 = vunpack.c.0.s8 %v42
    %v44 = vlaneseq
    %v45 = vshrl.u32 %v44, 7
    %v46 = vsub.s32 %v43, %v45
    %v47 = vrot.slane %v39, %v46
    %v49 = vunpack.c.l.s4 1983009808
    %v50 = vunpack.c.0.s8 %v49
    %v51 = vlaneseq
    %v52 = vshrl.u32 %v51, 7
    %v53 = vsub.s32 %v50, %v52
    %v54 = vrot.slane %v40, %v53
    %v55 = vcombine.low %v47, %v54
    %57 = vst [vmem:[#allocation5] sm:$0xff] %v55
    // Predicated region
    $region10: #{tpu_custom_call.1} parent=1 // pred_check
      _
    $region11: #{tpu_custom_call.1} parent=1 // pred_check_branch
      %59 = sbr.rel (0) target = $region13
    $region12: #{tpu_custom_call.1} parent=1 // pred_region
      %s61 = ssub.s32 128, 128
      %62 = vsyncadd [#allocation4], %s61
      %s64 = sshll.u32 [#allocation5], 4
      %s65 = int_to_ptr.vmem [resolvable:$true] %s64
      %67 = dma.vmem_to_hbm [thread:$0]  %s65, 128, %s1, [#allocation4]
    $region13: #{tpu_custom_call.1} parent=1 // pred_fallthru
      _
    // Predicated region
    $region14: #{tpu_custom_call.1} parent=1 // pred_check
      _
    $region15: #{tpu_custom_call.1} parent=1 // pred_check_branch
      %69 = sbr.rel (0) target = $region17
    $region16: #{tpu_custom_call.1} parent=1 // pred_region
      %70 = dma.done [#allocation4], 128
    $region17: #{tpu_custom_call.1} parent=1 // pred_fallthru
      _
    %71 = vsyncpa [#allocation3], 1
    %72 = vsyncpa [#allocation4], 1

</llo_original>
